<compile_context>
chip_gen: v7x
topology: tpu7x:2x2x1
jax: 0.10.0
libtpu: 0.0.40
codegen_flags: <defaults>
</compile_context>

<pallas_src>
import jax
import jax.numpy as jnp
from jax.experimental import pallas as pl
from jax.experimental.pallas import tpu as pltpu


def _round_up(x, m):
    return ((x + m - 1) // m) * m


def _make_wsloss_kernel(tile_n, n_valid, num_classes, tiles_per_partial):
    inv_n = 1.0 / float(n_valid)
    inv_c = 1.0 / float(num_classes)

    def kernel(out_ref, tgt_ref, pre_ref, loss_ref):
        c = pl.program_id(0)          # partial / TensorCore slice
        i = pl.program_id(1)          # row tile within the slice

        @pl.when(i == 0)
        def _init():
            loss_ref[0, 0] = jnp.float32(0.0)

        logits = out_ref[...].astype(jnp.float32)                  # (tile_n, C)
        diff = pre_ref[...].astype(jnp.float32) - logits

        # --- fused per-row reduction: class-mean of diff^2 minus the picked
        #     target logit (one XLU pass instead of two) ---
        lane = jax.lax.broadcasted_iota(jnp.int32, logits.shape, 1)
        tgt = tgt_ref[...]                                         # (tile_n, 1) i32
        fused = diff * diff * inv_c - jnp.where(lane == tgt, logits, 0.0)
        fused_row = jnp.sum(fused, axis=1, keepdims=True)          # (tile_n, 1)

        # --- stable log-sum-exp ---
        m = jnp.max(logits, axis=1, keepdims=True)
        lse = m + jnp.log(jnp.sum(jnp.exp(logits - m), axis=1, keepdims=True))

        # per-row contribution: (lse - picked) + mean_lanes(diff^2)
        per_row = lse + fused_row                                  # (tile_n, 1)

        # mask rows that are ragged-tail / overshoot padding (global row >= N);
        # jnp.where also squashes any NaNs produced from stale VMEM rows.
        row = jax.lax.broadcasted_iota(jnp.int32, per_row.shape, 0)
        grow = (c * tiles_per_partial + i) * tile_n + row
        per_row = jnp.where(grow < n_valid, per_row, 0.0)

        loss_ref[0, 0] += jnp.sum(per_row) * inv_n

    return kernel


def ws_loss(output, target, pre_output, *, tile_rows=None):
    """Pallas implementation of WSLoss.forward(output, target, pre_output)."""
    N, C = output.shape
    assert pre_output.shape == (N, C)
    itemsize = jnp.dtype(output.dtype).itemsize

    # Row-tile size: largest multiple of 8 keeping ~4 MiB per logit input per
    # pipeline buffer, additionally capped at 4096 rows so the lane-padded
    # int32 target buffers (tile_n * 512 B each) stay small.
    if tile_rows is None:
        budget_rows = max(8, (4 * 1024 * 1024) // max(1, C * itemsize))
        tile_n = min(_round_up(N, 8), (budget_rows // 8) * 8, 4096)
    else:
        tile_n = _round_up(int(tile_rows), 8)
    tile_n = max(min(tile_n, _round_up(N, 8)), 8)

    num_tiles = pl.cdiv(N, tile_n)
    # Two partial accumulators so the row grid can split across v7x's two
    # TensorCores; on single-TC chips the extra axis is just a serial loop.
    num_partials = 2 if num_tiles >= 2 else 1
    tiles_per_partial = pl.cdiv(num_tiles, num_partials)
    last_tile = num_tiles - 1

    tgt2d = target.astype(jnp.int32).reshape(N, 1)

    kernel = _make_wsloss_kernel(tile_n, N, C, tiles_per_partial)

    def row_map(c, i):
        # Clamp the (at most one) overshoot grid slot onto the last real tile;
        # its rows are fully masked inside the kernel.
        t = c * tiles_per_partial + i
        return (jnp.minimum(t, last_tile), 0)

    # 2 logit inputs x 2 pipeline buffers + lane-padded target buffers + headroom.
    vmem_limit = int(min(
        4 * tile_n * C * itemsize + 2 * tile_n * 128 * 4 + (8 << 20),
        32 << 20))

    partials = pl.pallas_call(
        kernel,
        out_shape=jax.ShapeDtypeStruct((num_partials, 1), jnp.float32),
        grid=(num_partials, tiles_per_partial),
        in_specs=[
            pl.BlockSpec((tile_n, C), row_map),    # output logits (native dtype)
            pl.BlockSpec((tile_n, 1), row_map),    # target class ids (int32)
            pl.BlockSpec((tile_n, C), row_map),    # pre_output logits
        ],
        out_specs=pl.BlockSpec((1, 1), lambda c, i: (c, 0),
                               memory_space=pltpu.MemorySpace.SMEM),
        compiler_params=pltpu.CompilerParams(
            dimension_semantics=("parallel", "arbitrary"),
            vmem_limit_bytes=vmem_limit),
    )(output, tgt2d, pre_output)

    return jnp.sum(partials)


def ws_loss_ref(output, target, pre_output):
    # Pure-JAX reference of the PyTorch forward (computed in f32).
    logits = output.astype(jnp.float32)
    pre = pre_output.astype(jnp.float32)
    logp = jax.nn.log_softmax(logits, axis=-1)
    ce = -jnp.mean(jnp.take_along_axis(
        logp, target[:, None].astype(jnp.int32), axis=1))
    mse = jnp.mean((pre - logits) ** 2)
    return ce + mse


if __name__ == "__main__":
    # --- case 1: small f32 classifier head (single-tile / single-partial path) ---
    k1, k2, k3 = jax.random.split(jax.random.PRNGKey(0), 3)
    N, C = 8, 32
    output = jax.random.normal(k1, (N, C), dtype=jnp.float32)
    pre_output = jax.random.normal(k2, (N, C), dtype=jnp.float32)
    target = jax.random.randint(k3, (N,), 0, C, dtype=jnp.int32)

    loss = jax.block_until_ready(ws_loss(output, target, pre_output))
    ref = ws_loss_ref(output, target, pre_output)
    assert jnp.allclose(loss, ref, atol=1e-5, rtol=1e-5), (loss, ref)

    # --- case 2: bf16 inputs, forced small tile -> (2, T) grid, ragged last
    #     tile (no wrapper padding) and SMEM partial accumulation ---
    k4, k5, k6 = jax.random.split(jax.random.PRNGKey(1), 3)
    N2, C2 = 200, 96
    output2 = jax.random.normal(k4, (N2, C2), dtype=jnp.bfloat16)
    pre_output2 = jax.random.normal(k5, (N2, C2), dtype=jnp.bfloat16)
    target2 = jax.random.randint(k6, (N2,), 0, C2, dtype=jnp.int32)

    loss2 = jax.block_until_ready(
        ws_loss(output2, target2, pre_output2, tile_rows=64))
    ref2 = ws_loss_ref(output2, target2, pre_output2)
    assert jnp.allclose(loss2, ref2, atol=1e-4, rtol=1e-4), (loss2, ref2)

    # --- case 3: odd number of tiles -> exercises the clamped index_map
    #     (one fully-masked overshoot grid slot) plus ragged last tile ---
    k7, k8, k9 = jax.random.split(jax.random.PRNGKey(2), 3)
    N3, C3 = 200, 96
    output3 = jax.random.normal(k7, (N3, C3), dtype=jnp.float32)
    pre_output3 = jax.random.normal(k8, (N3, C3), dtype=jnp.float32)
    target3 = jax.random.randint(k9, (N3,), 0, C3, dtype=jnp.int32)

    loss3 = jax.block_until_ready(
        ws_loss(output3, target3, pre_output3, tile_rows=80))
    ref3 = ws_loss_ref(output3, target3, pre_output3)
    assert jnp.allclose(loss3, ref3, atol=1e-5, rtol=1e-5), (loss3, ref3)

    print("KERNEL_OK")
</pallas_src>

<mosaic_0001>
module attributes {stable_mosaic.version = 11 : i64} {
  func.func @kernel(%arg0: i32, %arg1: i32, %arg2: memref<8x32xf32, #tpu.memory_space<vmem>>, %arg3: memref<8x1xi32, #tpu.memory_space<vmem>>, %arg4: memref<8x32xf32, #tpu.memory_space<vmem>>, %arg5: memref<1x1xf32, #tpu.memory_space<smem>>) attributes {dimension_semantics = [#tpu.dimension_semantics<parallel>, #tpu.dimension_semantics<arbitrary>], iteration_bounds = array<i64: 1, 1>, scalar_prefetch = 0 : i64, scratch_operands = 0 : i64, tpu.core_type = #tpu.core_type<tc>, window_params = [{transform_indices = @transform_0, window_bounds = array<i64: 8, 32>}, {transform_indices = @transform_1, window_bounds = array<i64: 8, 1>}, {transform_indices = @transform_2, window_bounds = array<i64: 8, 32>}, {transform_indices = @transform_3, window_bounds = array<i64: 1, 1>}]} {
    %c0_i32 = arith.constant 0 : i32
    %0 = arith.cmpi eq, %arg1, %c0_i32 : i32
    %1 = arith.extui %0 : i1 to i32
    %c0_i32_0 = arith.constant 0 : i32
    %2 = arith.cmpi ne, %1, %c0_i32_0 : i32
    scf.if %2 {
      %cst_18 = arith.constant 0.000000e+00 : f32
      %c0_19 = arith.constant 0 : index
      %c0_20 = arith.constant 0 : index
      %46 = memref.load %arg5[%c0_19, %c0_20] : memref<1x1xf32, #tpu.memory_space<smem>>
      memref.store %cst_18, %arg5[%c0_19, %c0_20] : memref<1x1xf32, #tpu.memory_space<smem>>
    } else {
    }
    %c0 = arith.constant 0 : index
    %c0_1 = arith.constant 0 : index
    %3 = vector.load %arg2[%c0, %c0_1] : memref<8x32xf32, #tpu.memory_space<vmem>>, vector<8x32xf32>
    %c0_2 = arith.constant 0 : index
    %c0_3 = arith.constant 0 : index
    %4 = vector.load %arg4[%c0_2, %c0_3] : memref<8x32xf32, #tpu.memory_space<vmem>>, vector<8x32xf32>
    %5 = arith.subf %4, %3 : vector<8x32xf32>
    %6 = tpu.iota {dimensions = array<i32: 1>} : vector<8x32xi32>
    %c0_4 = arith.constant 0 : index
    %c0_5 = arith.constant 0 : index
    %7 = vector.load %arg3[%c0_4, %c0_5] : memref<8x1xi32, #tpu.memory_space<vmem>>, vector<8x1xi32>
    %8 = arith.mulf %5, %5 : vector<8x32xf32>
    %cst = arith.constant 3.125000e-02 : f32
    %9 = vector.broadcast %cst : f32 to vector<8x32xf32>
    %10 = arith.mulf %8, %9 : vector<8x32xf32>
    %11 = vector.broadcast %7 : vector<8x1xi32> to vector<8x32xi32>
    %12 = arith.cmpi eq, %6, %11 : vector<8x32xi32>
    %cst_6 = arith.constant 0.000000e+00 : f32
    %13 = vector.broadcast %cst_6 : f32 to vector<8x32xf32>
    %14 = arith.select %12, %3, %13 : vector<8x32xi1>, vector<8x32xf32>
    %15 = arith.subf %10, %14 : vector<8x32xf32>
    %cst_7 = arith.constant dense<0.000000e+00> : vector<8xf32>
    %16 = vector.multi_reduction <add>, %15, %cst_7 [1] : vector<8x32xf32> to vector<8xf32>
    %17 = vector.shape_cast %16 : vector<8xf32> to vector<8x1xf32>
    %cst_8 = arith.constant dense<0xFF800000> : vector<8xf32>
    %18 = vector.multi_reduction <maximumf>, %3, %cst_8 [1] : vector<8x32xf32> to vector<8xf32>
    %19 = vector.shape_cast %18 : vector<8xf32> to vector<8x1xf32>
    %20 = vector.broadcast %19 : vector<8x1xf32> to vector<8x32xf32>
    %21 = arith.subf %3, %20 : vector<8x32xf32>
    %22 = math.exp %21 : vector<8x32xf32>
    %cst_9 = arith.constant dense<0.000000e+00> : vector<8xf32>
    %23 = vector.multi_reduction <add>, %22, %cst_9 [1] : vector<8x32xf32> to vector<8xf32>
    %24 = vector.shape_cast %23 : vector<8xf32> to vector<8x1xf32>
    %25 = math.log %24 : vector<8x1xf32>
    %26 = arith.addf %19, %25 : vector<8x1xf32>
    %27 = arith.addf %26, %17 : vector<8x1xf32>
    %28 = tpu.iota {dimensions = array<i32: 0>} : vector<8x1xi32>
    %c1_i32 = arith.constant 1 : i32
    %29 = arith.muli %arg0, %c1_i32 : i32
    %30 = arith.addi %29, %arg1 : i32
    %c8_i32 = arith.constant 8 : i32
    %31 = arith.muli %30, %c8_i32 : i32
    %32 = vector.broadcast %31 : i32 to vector<8x1xi32>
    %33 = arith.addi %32, %28 : vector<8x1xi32>
    %c8_i32_10 = arith.constant 8 : i32
    %34 = vector.broadcast %c8_i32_10 : i32 to vector<8x1xi32>
    %35 = arith.cmpi slt, %33, %34 : vector<8x1xi32>
    %cst_11 = arith.constant 0.000000e+00 : f32
    %36 = vector.broadcast %cst_11 : f32 to vector<8x1xf32>
    %37 = arith.select %35, %27, %36 : vector<8x1xi1>, vector<8x1xf32>
    %c0_12 = arith.constant 0 : index
    %c0_13 = arith.constant 0 : index
    %38 = memref.load %arg5[%c0_12, %c0_13] : memref<1x1xf32, #tpu.memory_space<smem>>
    %39 = vector.shape_cast %37 : vector<8x1xf32> to vector<1x8x1xf32>
    %cst_14 = arith.constant dense<0.000000e+00> : vector<1xf32>
    %40 = vector.multi_reduction <add>, %39, %cst_14 [1, 2] : vector<1x8x1xf32> to vector<1xf32>
    %41 = vector.shape_cast %40 : vector<1xf32> to vector<1x1x1xf32>
    %42 = vector.extract %41[0, 0, 0] : f32 from vector<1x1x1xf32>
    %cst_15 = arith.constant 1.250000e-01 : f32
    %43 = arith.mulf %42, %cst_15 : f32
    %44 = arith.addf %38, %43 : f32
    %c0_16 = arith.constant 0 : index
    %c0_17 = arith.constant 0 : index
    %45 = memref.load %arg5[%c0_16, %c0_17] : memref<1x1xf32, #tpu.memory_space<smem>>
    memref.store %44, %arg5[%c0_16, %c0_17] : memref<1x1xf32, #tpu.memory_space<smem>>
    return
  }
  func.func @transform_0(%arg0: i32, %arg1: i32) -> (i32, i32) {
    %c1_i32 = arith.constant 1 : i32
    %0 = arith.muli %arg0, %c1_i32 : i32
    %1 = arith.addi %0, %arg1 : i32
    %c0_i32 = arith.constant 0 : i32
    %2 = arith.minsi %1, %c0_i32 : i32
    %c0_i32_0 = arith.constant 0 : i32
    %c0_i32_1 = arith.constant 0 : i32
    return %2, %c0_i32_0 : i32, i32
  }
  func.func @transform_1(%arg0: i32, %arg1: i32) -> (i32, i32) {
    %c1_i32 = arith.constant 1 : i32
    %0 = arith.muli %arg0, %c1_i32 : i32
    %1 = arith.addi %0, %arg1 : i32
    %c0_i32 = arith.constant 0 : i32
    %2 = arith.minsi %1, %c0_i32 : i32
    %c0_i32_0 = arith.constant 0 : i32
    %c0_i32_1 = arith.constant 0 : i32
    return %2, %c0_i32_0 : i32, i32
  }
  func.func @transform_2(%arg0: i32, %arg1: i32) -> (i32, i32) {
    %c1_i32 = arith.constant 1 : i32
    %0 = arith.muli %arg0, %c1_i32 : i32
    %1 = arith.addi %0, %arg1 : i32
    %c0_i32 = arith.constant 0 : i32
    %2 = arith.minsi %1, %c0_i32 : i32
    %c0_i32_0 = arith.constant 0 : i32
    %c0_i32_1 = arith.constant 0 : i32
    return %2, %c0_i32_0 : i32, i32
  }
  func.func @transform_3(%arg0: i32, %arg1: i32) -> (i32, i32) {
    %c0_i32 = arith.constant 0 : i32
    %c0_i32_0 = arith.constant 0 : i32
    return %arg0, %c0_i32 : i32, i32
  }
}

</mosaic_0001>

<llo_original>
// kernel: tpu_custom_call.1
$region0: #{tpu_custom_call.1}
  #allocation0 [shape = 'u32[]', space=smem, size = 0x4, offset = 0x4, fixed_abs, tag = 'smem constant byte address 0x4 - core index']
  #allocation1 [shape = 'u32[144,128]{1,0:T(1,128)}', space=vmem, size = 0x12000, scoped, tag = 'internal scratch']
  %s0 = inlined_call_operand.vmem [shape: f32[8,32], index: 0, kind: input, shape index: {}]
  %s1 = inlined_call_operand.vmem [shape: s32[8,1], index: 1, kind: input, shape index: {}]
  %s2 = inlined_call_operand.vmem [shape: f32[8,32], index: 2, kind: input, shape index: {}]
  %s3 = inlined_call_operand.hbm [shape: f32[1,1], index: 3, kind: output, shape index: {}]
  %s4 = sld [smem:[#allocation0]]
  $region26: #{tpu_custom_call.1} parent=0
    _
  %s6 = ssub.s32 1, %s4
  %s7 = scalar_select 0, %s6, %s4
  $region1: #{tpu_custom_call.1} parent=0
    #allocation2 [shape = 'u8[512]{0}', space=smem, size = 0x200, scoped, tag = 'output window, operand 0, single buffered']
    #allocation3 [shape = 's32[1]{0}', space=sflag, size = 0x4, scoped, tag = 'scoped memory for tpu_custom_call.1']
    %8 = vsyncpa [#allocation3], 0
    // Predicated region
    $region2: #{tpu_custom_call.1} parent=1 // pred_check
      _
    $region3: #{tpu_custom_call.1} parent=1 // pred_check_branch
      %10 = sbr.rel (0) target = $region5
    $region4: #{tpu_custom_call.1} parent=1 // pred_region
      %s11 = sadd.s32 0, 0
      %p12 = scmp.lt.s32.totalorder %s11, 0
      %s13 = scalar_select %p12, %s11, 0
      %p14 = scmp.lt.s32.totalorder %s13, 0
      %s15 = scalar_select %p14, %s13, 0
      %s16 = smul.addr %s15, 8
      %s17 = scalar_lea.vmem %s0, %s16
      %s18 = sadd.s32 0, 0
      %p19 = scmp.lt.s32.totalorder %s18, 0
      %s20 = scalar_select %p19, %s18, 0
    $region5: #{tpu_custom_call.1} parent=1 // pred_fallthru
      _
    // Predicated region
    $region6: #{tpu_custom_call.1} parent=1 // pred_check
      _
    $region7: #{tpu_custom_call.1} parent=1 // pred_check_branch
      %22 = sbr.rel (0) target = $region9
    $region8: #{tpu_custom_call.1} parent=1 // pred_region
      %s23 = sadd.s32 0, 0
      %p24 = scmp.lt.s32.totalorder %s23, 0
      %s25 = scalar_select %p24, %s23, 0
      %p26 = scmp.lt.s32.totalorder %s25, 0
      %s27 = scalar_select %p26, %s25, 0
      %s28 = smul.addr %s27, 8
      %s29 = scalar_lea.vmem %s1, %s28
      %s30 = sadd.s32 0, 0
      %p31 = scmp.lt.s32.totalorder %s30, 0
      %s32 = scalar_select %p31, %s30, 0
    $region9: #{tpu_custom_call.1} parent=1 // pred_fallthru
      _
    // Predicated region
    $region10: #{tpu_custom_call.1} parent=1 // pred_check
      _
    $region11: #{tpu_custom_call.1} parent=1 // pred_check_branch
      %34 = sbr.rel (0) target = $region13
    $region12: #{tpu_custom_call.1} parent=1 // pred_region
      %s35 = sadd.s32 0, 0
      %p36 = scmp.lt.s32.totalorder %s35, 0
      %s37 = scalar_select %p36, %s35, 0
      %p38 = scmp.lt.s32.totalorder %s37, 0
      %s39 = scalar_select %p38, %s37, 0
      %s40 = smul.addr %s39, 8
      %s41 = scalar_lea.vmem %s2, %s40
      %s42 = sadd.s32 0, 0
      %p43 = scmp.lt.s32.totalorder %s42, 0
      %s44 = scalar_select %p43, %s42, 0
    $region13: #{tpu_custom_call.1} parent=1 // pred_fallthru
      _
    %s45 = sadd.s32 0, 0
    %p46 = scmp.lt.s32.totalorder %s45, 0
    %s47 = scalar_select %p46, %s45, 0
    %p48 = scmp.lt.s32.totalorder %s47, 0
    %s49 = scalar_select %p48, %s47, 0
    %s50 = smul.addr %s49, 8
    %s51 = scalar_lea.vmem %s0, %s50
    %s52 = sadd.s32 0, 0
    %p53 = scmp.lt.s32.totalorder %s52, 0
    %s54 = scalar_select %p53, %s52, 0
    %p55 = scmp.lt.s32.totalorder %s54, 0
    %s56 = scalar_select %p55, %s54, 0
    %s57 = smul.addr %s56, 8
    %s58 = scalar_lea.vmem %s1, %s57
    %s59 = sadd.s32 0, 0
    %p60 = scmp.lt.s32.totalorder %s59, 0
    %s61 = scalar_select %p60, %s59, 0
    %p62 = scmp.lt.s32.totalorder %s61, 0
    %s63 = scalar_select %p62, %s61, 0
    %s64 = smul.addr %s63, 8
    %s65 = scalar_lea.vmem %s2, %s64
    %s66 = sadd.s32 0, 0
    %p67 = scmp.lt.s32.totalorder %s66, 0
    %s68 = scalar_select %p67, %s66, 0
    %p69 = scmp.lt.s32.totalorder %s68, 0
    %s70 = scalar_select %p69, %s68, 0
    %s71 = smul.addr %s70, 8
    %s72 = scalar_lea.vmem %s0, %s71
    %s73 = sadd.s32 0, 0
    %p74 = scmp.lt.s32.totalorder %s73, 0
    %s75 = scalar_select %p74, %s73, 0
    %s76 = sadd.s32 0, 0
    %p77 = scmp.lt.s32.totalorder %s76, 0
    %s78 = scalar_select %p77, %s76, 0
    %p79 = scmp.lt.s32.totalorder %s78, 0
    %s80 = scalar_select %p79, %s78, 0
    %s81 = smul.addr %s80, 8
    %s82 = scalar_lea.vmem %s1, %s81
    %s83 = sadd.s32 0, 0
    %p84 = scmp.lt.s32.totalorder %s83, 0
    %s85 = scalar_select %p84, %s83, 0
    %s86 = sadd.s32 0, 0
    %p87 = scmp.lt.s32.totalorder %s86, 0
    %s88 = scalar_select %p87, %s86, 0
    %p89 = scmp.lt.s32.totalorder %s88, 0
    %s90 = scalar_select %p89, %s88, 0
    %s91 = smul.addr %s90, 8
    %s92 = scalar_lea.vmem %s2, %s91
    %s93 = sadd.s32 0, 0
    %p94 = scmp.lt.s32.totalorder %s93, 0
    %s95 = scalar_select %p94, %s93, 0
    %p96 = scmp.eq.s32.totalorder 0, 0
    // Predicated region
    $region14: #{tpu_custom_call.1} parent=1 // pred_check
      %p97 = pneg %p96
    $region15: #{tpu_custom_call.1} parent=1 // pred_check_branch
      %99 = sbr.rel (%p97) target = $region17
    $region16: #{tpu_custom_call.1} parent=1 // pred_region
      %s100 = scalar_lea.smem [#allocation2], 0
      %101 = sst [smem:[%s100]] 0.0
    $region17: #{tpu_custom_call.1} parent=1 // pred_fallthru
      _
    %v102 = vld [vmem:[%s72] sm:$0xff]
    %v103 = vld [vmem:[%s92] sm:$0xff]
    %v104 = vsub.f32 %v103, %v102
    %v105 = vlaneseq
    %v106 = vand.u32 %v105, 127
    %v107 = vld [vmem:[%s82] sm:$0xff]
    %v108 = vmul.f32 %v104, %v104
    %v109 = vmul.f32 %v108, 0.03125
    %110 = vset.pattern.permute.xlu0 0
    %111 = vperm.xlu0 %110, %v107
    %v112 = vpop.permute.xlu0 %111
    %vm113 = vcmp.eq.s32.totalorder %v106, %v112
    %v114 = vsel %vm113, %v102, 0.0
    %v115 = vsub.f32 %v109, %v114
    %vm116 = vcmask 261120
    %v117 = vsel %vm116, %v115, 0.0
    %118 = vadd.xlane.f32.xlu0 %v117
    %v119 = vpop.xlane.xlu0 %118
    %v120 = vsel %vm116, %v102, -inf
    %121 = vmax.xlane.f32.xlu0 %v120
    %v122 = vpop.xlane.xlu0 %121
    %v123 = vsub.f32 %v102, %v122
    %v124 = vmul.f32 %v123, 1.442695
    %v125 = vpow.pop %v124
    %v126 = vsel %vm116, %v125, 0.0
    %127 = vadd.xlane.f32.xlu0 %v126
    %v128 = vpop.xlane.xlu0 %127
    %v129 = vlog2.pop %v128
    %v130 = vmul.f32 %v129, 0.6931472
    %v131 = vadd.f32 %v122, %v130
    %v132 = vadd.f32 %v131, %v119
    %v133 = vlaneseq
    %v134 = vshrl.u32 %v133, 7
    %s135 = sadd.s32 0, 0
    %s136 = smul.u32 %s135, 8
    %v137 = vstv %s136
    %v138 = vadd.s32 %v137, %v134
    %vm139 = vcmp.lt.s32.totalorder %v138, 8
    %v140 = vsel %vm139, %v132, 0.0
    %s141 = sld [smem:[#allocation2]]
    %vm142 = vcmask 7168
    %v143 = vsel %vm142, %v140, 0.0
    %144 = vadd.xlane.f32.xlu0 %v143
    %v145 = vpop.xlane.xlu0 %144
    %v146 = vrot.slane %v145, 4
    %v147 = vadd.f32 %v145, %v146
    %v148 = vrot.slane %v147, 2
    %v149 = vadd.f32 %v147, %v148
    %v150 = vrot.slane %v149, 1
    %v151 = vadd.f32 %v149, %v150
    %s152 = vtos %v151
    %s153 = smul.f32 %s152, 0.125
    %s154 = sadd.f32 %s141, %s153
    %s155 = scalar_lea.smem [#allocation2], 0
    %156 = sst [smem:[%s155]] %s154
    // Predicated region
    $region18: #{tpu_custom_call.1} parent=1 // pred_check
      _
    $region19: #{tpu_custom_call.1} parent=1 // pred_check_branch
      %158 = sbr.rel (0) target = $region21
    $region20: #{tpu_custom_call.1} parent=1 // pred_region
      %s160 = ssub.s32 16, 16
      %161 = vsyncadd [#allocation3], %s160
      %164 = dma.smem_to_hbm [#allocation2], 16, %s3, [#allocation3]
    $region21: #{tpu_custom_call.1} parent=1 // pred_fallthru
      _
    // Predicated region
    $region22: #{tpu_custom_call.1} parent=1 // pred_check
      _
    $region23: #{tpu_custom_call.1} parent=1 // pred_check_branch
      %166 = sbr.rel (0) target = $region25
    $region24: #{tpu_custom_call.1} parent=1 // pred_region
      %167 = dma.done [#allocation3], 16
    $region25: #{tpu_custom_call.1} parent=1 // pred_fallthru
      _
    %168 = sfence
    %169 = vsyncpa [#allocation3], 1

</llo_original>
